<compile_context>
chip_gen: v7x
topology: tpu7x:2x2x1
jax: 0.10.0
libtpu: 0.0.40
codegen_flags: <defaults>
</compile_context>

<pallas_src>
import math
from functools import partial

import numpy as np
import jax
import jax.numpy as jnp
from jax.experimental import pallas as pl
from jax.experimental.pallas import tpu as pltpu


# ----------------------------------------------------------------------------
# In-kernel helpers (operate on loaded jnp values)
# ----------------------------------------------------------------------------

def _gelu(x):
    # matches ActivateFun._gelu: x * 0.5 * (1 + erf(x / sqrt(2)))
    return x * 0.5 * (1.0 + jax.lax.erf(x / math.sqrt(2.0)))


def _mm(a, b):
    """a @ b with bf16 MXU operands and f32 accumulation."""
    return jnp.dot(a.astype(jnp.bfloat16), b.astype(jnp.bfloat16),
                   preferred_element_type=jnp.float32)


def _mm_t(a, b):
    """a [M, K] x b [N, K]^T -> [M, N]; bf16 operands, f32 accumulation, no transpose op."""
    return jax.lax.dot_general(
        a.astype(jnp.bfloat16), b.astype(jnp.bfloat16),
        dimension_numbers=(((1,), (1,)), ((), ())),
        preferred_element_type=jnp.float32)


def _ln(x, g, b, eps=1e-5):
    mu = jnp.mean(x, axis=-1, keepdims=True)
    var = jnp.mean(jnp.square(x - mu), axis=-1, keepdims=True)
    return (x - mu) * jax.lax.rsqrt(var + eps) * g + b


def _mha(xq2, xkv2, w_qkv, b_qkv, wo, bo, B, Sq, Sk, n_head, dh, scale, self_attn):
    """Multi-head attention on 2-D [B*S, D] inputs; returns [B*Sq, D] (pre-residual).

    Fused QKV weight layout: w_qkv = [wq | wk | wv] along the output axis.
    Heads are processed inside the kernel via static lane slices; the output
    projection is accumulated per head (o @ wo == sum_h o_h @ wo_h), avoiding
    any lane-dim concat/reshape.
    """
    HD = n_head * dh
    if self_attn:
        qkv = _mm(xq2, w_qkv) + b_qkv                      # one fused matmul
        q2, k2, v2 = qkv[:, :HD], qkv[:, HD:2 * HD], qkv[:, 2 * HD:]
    else:
        q2 = _mm(xq2, w_qkv[:, :HD]) + b_qkv[:, :HD]       # Q from query stream
        kv = _mm(xkv2, w_qkv[:, HD:]) + b_qkv[:, HD:]      # fused K|V from kv stream
        k2, v2 = kv[:, :HD], kv[:, HD:]

    q3 = q2.reshape(B, Sq, HD)
    k3 = k2.reshape(B, Sk, HD)
    v3 = v2.reshape(B, Sk, HD)

    out = None
    for h in range(n_head):
        sl = slice(h * dh, (h + 1) * dh)
        s = jnp.einsum('bqd,bkd->bqk',
                       q3[:, :, sl].astype(jnp.bfloat16),
                       k3[:, :, sl].astype(jnp.bfloat16),
                       preferred_element_type=jnp.float32) * scale
        s = s - jnp.max(s, axis=-1, keepdims=True)
        p = jnp.exp(s)
        p = p / jnp.sum(p, axis=-1, keepdims=True)
        oh = jnp.einsum('bqk,bkd->bqd',
                        p.astype(jnp.bfloat16),
                        v3[:, :, sl].astype(jnp.bfloat16),
                        preferred_element_type=jnp.float32)      # [B, Sq, dh]
        contrib = _mm(oh.reshape(B * Sq, dh), wo[sl, :])         # [B*Sq, D]
        out = contrib if out is None else out + contrib
    return out + bo


# ----------------------------------------------------------------------------
# Pallas kernels
# ----------------------------------------------------------------------------

def _linear_kernel(x_ref, w_ref, b_ref, o_ref, *, act):
    y = _mm(x_ref[...], w_ref[...]) + b_ref[...]
    if act == "gelu":
        y = _gelu(y)
    elif act == "relu":
        y = jnp.maximum(y, 0.0)
    o_ref[...] = y


def _text_front_kernel(x_ref, wtc_ref, btc_ref, wg_ref, bg_ref, ti_ref, tg_ref):
    """text_change (linear + gelu) fused with the DADGNN-stub projection."""
    t = _gelu(_mm(x_ref[...], wtc_ref[...]) + btc_ref[...])
    ti_ref[...] = t
    tg_ref[...] = _mm(t, wg_ref[...]) + bg_ref[...]


def _mha_ln_kernel(q_ref, kv_ref, wqkv_ref, bqkv_ref, wo_ref, bo_ref, g_ref, b_ref,
                   o_ref, *, n_head, dh, scale, self_attn, eps):
    """Fused multi-head attention + residual + LayerNorm (one pallas_call)."""
    B, Sq, D = q_ref.shape
    Sk = kv_ref.shape[1]
    xq2 = q_ref[...].reshape(B * Sq, D)
    xkv2 = kv_ref[...].reshape(B * Sk, D)
    attn = _mha(xq2, xkv2, wqkv_ref[...], bqkv_ref[...], wo_ref[...], bo_ref[...],
                B, Sq, Sk, n_head, dh, scale, self_attn)
    y = _ln(attn + xq2, g_ref[...], b_ref[...], eps)
    o_ref[...] = y.reshape(B, Sq, D)


def _ffn_ln_kernel(x_ref, w1_ref, b1_ref, w2_ref, b2_ref, g_ref, bln_ref, o_ref, *, eps):
    """Fused position-wise FFN (linear-relu-linear) + residual + LayerNorm."""
    B, S, D = x_ref.shape
    x2 = x_ref[...].reshape(B * S, D)
    h = jnp.maximum(_mm(x2, w1_ref[...]) + b1_ref[...], 0.0)
    h = _mm(h, w2_ref[...]) + b2_ref[...]
    y = _ln(x2 + h, g_ref[...], bln_ref[...], eps)
    o_ref[...] = y.reshape(B, S, D)


def _encoder_layer_kernel(x_ref, wqkv_ref, bqkv_ref, wo_ref, bo_ref, g1_ref, b1_ref,
                          w1_ref, bf1_ref, w2_ref, bf2_ref, g2_ref, b2_ref, o_ref,
                          *, n_head, dh, scale, eps):
    """One full nn.TransformerEncoderLayer (post-LN, relu FFN) in a single kernel."""
    B, S, D = x_ref.shape
    x2 = x_ref[...].reshape(B * S, D)
    attn = _mha(x2, x2, wqkv_ref[...], bqkv_ref[...], wo_ref[...], bo_ref[...],
                B, S, S, n_head, dh, scale, self_attn=True)
    x2 = _ln(x2 + attn, g1_ref[...], b1_ref[...], eps)
    h = jnp.maximum(_mm(x2, w1_ref[...]) + bf1_ref[...], 0.0)
    h = _mm(h, w2_ref[...]) + bf2_ref[...]
    x2 = _ln(x2 + h, g2_ref[...], b2_ref[...], eps)
    o_ref[...] = x2.reshape(B, S, D)


def _pool_classify_kernel(x_ref, w1_ref, b1_ref, w2_ref, b2_ref, o_ref):
    """fuse_type='ave' pooling over the sequence axis + 2-layer classifier head."""
    x = x_ref[...]                                   # [B, S, D]
    pooled = jnp.sum(x, axis=1) / x.shape[1]
    h = _gelu(_mm(pooled, w1_ref[...]) + b1_ref[...])
    # C=2 output keeps the reference shape; at this size the masked lane store is
    # negligible (lane-dense padding would only matter for large heads).
    o_ref[...] = _mm(h, w2_ref[...]) + b2_ref[...]


def _ita_kernel(temp_ref, img_ref, txt_ref, imgq_ref, txtq_ref, loss_ref,
                m_i, l_i, w_i, m_t, l_t, w_t, *, alpha):
    """Image-text contrastive (ITA) loss, queue axis streamed in (D, TM) tiles.

    Online-softmax accumulators (per row): running max m, l = sum exp(s-m),
    w = sum exp(s-m)*s.  With targets t = alpha*softmax(s) + (1-alpha)*diag and
    sum_j t_j == 1, each row's loss is  logsumexp(s) - alpha*(w/l) - (1-alpha)*s_ii.
    """
    k = pl.program_id(0)
    inv_t = 1.0 / temp_ref[0]
    img = img_ref[...]                               # [B, D] (L2-normalized)
    txt = txt_ref[...]

    # --- step 0: fold in the current-batch similarity columns and init the stats ---
    @pl.when(k == 0)
    def _():
        s_bi = _mm_t(img, txt) * inv_t               # sim_i2t batch columns [B, B]
        s_bt = _mm_t(txt, img) * inv_t               # sim_t2i batch columns [B, B]
        for m_r, l_r, w_r, s in ((m_i, l_i, w_i, s_bi), (m_t, l_t, w_t, s_bt)):
            m_new = jnp.max(s, axis=-1, keepdims=True)
            e = jnp.exp(s - m_new)
            m_r[...] = m_new
            l_r[...] = jnp.sum(e, axis=-1, keepdims=True)
            w_r[...] = jnp.sum(e * s, axis=-1, keepdims=True)

    # --- streamed queue tile: online-softmax update for both directions ---
    s_qi = _mm(img, txtq_ref[...]) * inv_t           # [B, TM]
    s_qt = _mm(txt, imgq_ref[...]) * inv_t
    for m_r, l_r, w_r, s in ((m_i, l_i, w_i, s_qi), (m_t, l_t, w_t, s_qt)):
        m_old = m_r[...]
        m_new = jnp.maximum(m_old, jnp.max(s, axis=-1, keepdims=True))
        r = jnp.exp(m_old - m_new)
        e = jnp.exp(s - m_new)
        m_r[...] = m_new
        l_r[...] = l_r[...] * r + jnp.sum(e, axis=-1, keepdims=True)
        w_r[...] = w_r[...] * r + jnp.sum(e * s, axis=-1, keepdims=True)

    # --- finalize on the last tile ---
    @pl.when(k == pl.num_programs(0) - 1)
    def _():
        d = jnp.sum(img * txt, axis=-1, keepdims=True) * inv_t   # diagonal logits s_ii
        li2t = jnp.mean(m_i[...] + jnp.log(l_i[...])
                        - alpha * (w_i[...] / l_i[...]) - (1.0 - alpha) * d)
        lt2i = jnp.mean(m_t[...] + jnp.log(l_t[...])
                        - alpha * (w_t[...] / l_t[...]) - (1.0 - alpha) * d)
        loss_ref[0] = (li2t + lt2i) * 0.5


# ----------------------------------------------------------------------------
# pallas_call wrappers
# ----------------------------------------------------------------------------

def _fb(shape):
    """Full-array block for a grid=(1,) kernel."""
    zeros = (0,) * len(shape)
    return pl.BlockSpec(shape, lambda i, _z=zeros: _z)


def linear(x, w, b, act="none"):
    M, K = x.shape
    N = w.shape[1]
    return pl.pallas_call(
        partial(_linear_kernel, act=act),
        grid=(1,),
        in_specs=[_fb((M, K)), _fb((K, N)), _fb((1, N))],
        out_specs=_fb((M, N)),
        out_shape=jax.ShapeDtypeStruct((M, N), jnp.float32),
    )(x, w, b.reshape(1, N))


def text_front(x, w_tc, b_tc, w_g, b_g):
    M, K = x.shape
    D = w_tc.shape[1]
    return pl.pallas_call(
        _text_front_kernel,
        grid=(1,),
        in_specs=[_fb((M, K)), _fb((K, D)), _fb((1, D)), _fb((D, D)), _fb((1, D))],
        out_specs=[_fb((M, D)), _fb((M, D))],
        out_shape=(jax.ShapeDtypeStruct((M, D), jnp.float32),
                   jax.ShapeDtypeStruct((M, D), jnp.float32)),
    )(x, w_tc, b_tc.reshape(1, D), w_g, b_g.reshape(1, D))


def mha_ln_block(q_in, kv_in, p, n_head, dh):
    B, Sq, D = q_in.shape
    Sk = kv_in.shape[1]
    HD = n_head * dh
    scale = 1.0 / math.sqrt(dh)
    return pl.pallas_call(
        partial(_mha_ln_kernel, n_head=n_head, dh=dh, scale=scale,
                self_attn=False, eps=1e-5),
        grid=(1,),
        in_specs=[_fb((B, Sq, D)), _fb((B, Sk, D)),
                  _fb((D, 3 * HD)), _fb((1, 3 * HD)),
                  _fb((HD, D)), _fb((1, D)), _fb((1, D)), _fb((1, D))],
        out_specs=_fb((B, Sq, D)),
        out_shape=jax.ShapeDtypeStruct((B, Sq, D), jnp.float32),
    )(q_in, kv_in, p["w_qkv"], p["b_qkv"].reshape(1, 3 * HD),
      p["wo"], p["bo"].reshape(1, D),
      p["ln_g"].reshape(1, D), p["ln_b"].reshape(1, D))


def ffn_ln_block(x, p):
    B, S, D = x.shape
    H = p["w1"].shape[1]
    return pl.pallas_call(
        partial(_ffn_ln_kernel, eps=1e-5),
        grid=(1,),
        in_specs=[_fb((B, S, D)), _fb((D, H)), _fb((1, H)),
                  _fb((H, D)), _fb((1, D)), _fb((1, D)), _fb((1, D))],
        out_specs=_fb((B, S, D)),
        out_shape=jax.ShapeDtypeStruct((B, S, D), jnp.float32),
    )(x, p["w1"], p["b1"].reshape(1, H), p["w2"], p["b2"].reshape(1, D),
      p["ln_g"].reshape(1, D), p["ln_b"].reshape(1, D))


def encoder_layer_block(x, p, n_head, dh):
    B, S, D = x.shape
    HD = n_head * dh     # == D for nn.TransformerEncoderLayer
    H_ff = p["ff_w1"].shape[1]
    scale = 1.0 / math.sqrt(dh)
    return pl.pallas_call(
        partial(_encoder_layer_kernel, n_head=n_head, dh=dh, scale=scale, eps=1e-5),
        grid=(1,),
        in_specs=[_fb((B, S, D)),
                  _fb((D, 3 * HD)), _fb((1, 3 * HD)), _fb((HD, D)), _fb((1, D)),
                  _fb((1, D)), _fb((1, D)),
                  _fb((D, H_ff)), _fb((1, H_ff)), _fb((H_ff, D)), _fb((1, D)),
                  _fb((1, D)), _fb((1, D))],
        out_specs=_fb((B, S, D)),
        out_shape=jax.ShapeDtypeStruct((B, S, D), jnp.float32),
    )(x, p["w_qkv"], p["b_qkv"].reshape(1, 3 * HD), p["wo"], p["bo"].reshape(1, D),
      p["ln1_g"].reshape(1, D), p["ln1_b"].reshape(1, D),
      p["ff_w1"], p["ff_b1"].reshape(1, H_ff), p["ff_w2"], p["ff_b2"].reshape(1, D),
      p["ln2_g"].reshape(1, D), p["ln2_b"].reshape(1, D))


def pool_classify(x, w1, b1, w2, b2):
    B, S, D = x.shape
    H = w1.shape[1]
    C = w2.shape[1]
    return pl.pallas_call(
        _pool_classify_kernel,
        grid=(1,),
        in_specs=[_fb((B, S, D)), _fb((D, H)), _fb((1, H)), _fb((H, C)), _fb((1, C))],
        out_specs=_fb((B, C)),
        out_shape=jax.ShapeDtypeStruct((B, C), jnp.float32),
    )(x, w1, b1.reshape(1, H), w2, b2.reshape(1, C))


def ita_loss(image_feat, text_feat, image_queue, text_queue, temp, alpha, tm=128):
    """tm = queue tile width (lanes); raise to 1024-2048 at the production queue
    size (65536) -- the kernel streams the queues, so VMEM stays bounded."""
    B, D = image_feat.shape
    Q = image_queue.shape[1]
    tm = min(tm, Q)
    assert Q % tm == 0, "queue size must be a multiple of the tile width"
    nt = Q // tm
    out = pl.pallas_call(
        partial(_ita_kernel, alpha=alpha),
        grid=(nt,),
        in_specs=[
            pl.BlockSpec(memory_space=pltpu.MemorySpace.SMEM),     # temp
            pl.BlockSpec((B, D), lambda k: (0, 0)),                # image_feat
            pl.BlockSpec((B, D), lambda k: (0, 0)),                # text_feat
            pl.BlockSpec((D, tm), lambda k: (0, k)),               # image_queue tile
            pl.BlockSpec((D, tm), lambda k: (0, k)),               # text_queue tile
        ],
        out_specs=pl.BlockSpec(memory_space=pltpu.MemorySpace.SMEM),
        out_shape=jax.ShapeDtypeStruct((1,), jnp.float32),
        scratch_shapes=[pltpu.VMEM((B, 1), jnp.float32)] * 6,
        compiler_params=pltpu.CompilerParams(dimension_semantics=("arbitrary",)),
    )(temp.reshape(1), image_feat, text_feat, image_queue, text_queue)
    return out[0]


# ----------------------------------------------------------------------------
# CLModel forward (glue around the fused Pallas kernels)
# ----------------------------------------------------------------------------

def cl_model_forward(params, text_hidden, image_hidden, alpha=0.5):
    """CLModel.forward (fuse_type='ave', eval mode).

    text_hidden / image_hidden stand in for the frozen BERT / ViT last_hidden_state.
    """
    B, St, Dbert = text_hidden.shape
    _, Si, D = image_hidden.shape

    # --- FuseModel front: text_change (linear+gelu) fused with DADGNN stub ---
    # TODO(synk): DADGNN graph network has no reference implementation available;
    # stubbed as a deterministic shared linear projection D->D (same [B, S, D] shape).
    text_init2, text_gnn2 = text_front(
        text_hidden.reshape(B * St, Dbert),
        params["text_change"]["w"], params["text_change"]["b"],
        params["dadgnn"]["w"], params["dadgnn"]["b"])
    text_init = text_init2.reshape(B, St, D)
    text_gnn = text_gnn2.reshape(B, St, D)
    image_init = image_hidden
    image_gnn = linear(image_hidden.reshape(B * Si, D),
                       params["dadgnn"]["w"], params["dadgnn"]["b"]).reshape(B, Si, D)
    text_length = np.array([St + Si] * B)          # cap_length for fuse_type='ave'

    # --- layers.MultiHeadAttention(8, D, D, D): q=image, k=v=text ---
    # TODO(synk): layers.MultiHeadAttention source is not provided; implemented as
    # standard n_head attention (d_k = D per head) + residual + post-LayerNorm.
    out = mha_ln_block(image_gnn, text_gnn, params["mha"], n_head=8, dh=D)

    # --- PositionwiseFeedForward(D, D): relu MLP + residual + LayerNorm ---
    out = ffn_ln_block(out, params["pwff"])

    # --- nn.TransformerEncoder: batch_first=False, so dim 0 is treated as the
    # sequence axis (attention mixes across the original batch axis) ---
    x = jnp.transpose(out, (1, 0, 2))              # [Si, B, D]
    for lp in params["encoder"]:
        x = encoder_layer_block(x, lp, n_head=D // 64, dh=64)
    out = jnp.transpose(x, (1, 0, 2))              # back to [B, Si, D]

    # --- fuse 'ave' pooling + output_classify (Dropout -> identity in eval) ---
    logits = pool_classify(out, params["cls"]["w1"], params["cls"]["b1"],
                           params["cls"]["w2"], params["cls"]["b2"])

    # --- contrastive (ITA) branch: queues streamed inside the kernel ---
    image_feat = image_init[:, 0, :]
    image_feat = image_feat / jnp.linalg.norm(image_feat, axis=-1, keepdims=True)
    text_feat = text_init[:, 0, :]
    text_feat = text_feat / jnp.linalg.norm(text_feat, axis=-1, keepdims=True)
    temp = jnp.clip(params["temp"], 0.001, 0.5)
    loss_ita = ita_loss(image_feat, text_feat,
                        params["image_queue"], params["text_queue"], temp, alpha)

    # TODO(synk): _dequeue_and_enqueue mutates persistent buffers in-place; returned
    # here as new functional state (ptr=0) instead.
    new_image_queue = jax.lax.dynamic_update_slice(params["image_queue"], image_feat.T, (0, 0))
    new_text_queue = jax.lax.dynamic_update_slice(params["text_queue"], text_feat.T, (0, 0))

    return logits, image_init, text_init, text_length, loss_ita, (new_image_queue, new_text_queue)


# ----------------------------------------------------------------------------
# Deterministic parameter init
# ----------------------------------------------------------------------------

def init_params(key, D, D_bert, n_layers, queue_size):
    keys = jax.random.split(key, 64)
    ki = iter(keys)

    def dense(fan_in, fan_out):
        w = jax.random.normal(next(ki), (fan_in, fan_out), jnp.float32) * 0.02
        b = jnp.zeros((fan_out,), jnp.float32)
        return w, b

    p = {}
    w, b = dense(D_bert, D); p["text_change"] = {"w": w, "b": b}
    w, b = dense(D, D);      p["dadgnn"] = {"w": w, "b": b}

    # layers.MultiHeadAttention(8, D, D, D): 8 heads, d_k = d_v = D per head (fused QKV)
    HD = 8 * D
    mha = {}
    mha["w_qkv"], mha["b_qkv"] = dense(D, 3 * HD)
    mha["wo"], mha["bo"] = dense(HD, D)
    mha["ln_g"] = jnp.ones((D,), jnp.float32); mha["ln_b"] = jnp.zeros((D,), jnp.float32)
    p["mha"] = mha

    pwff = {}
    pwff["w1"], pwff["b1"] = dense(D, D)
    pwff["w2"], pwff["b2"] = dense(D, D)
    pwff["ln_g"] = jnp.ones((D,), jnp.float32); pwff["ln_b"] = jnp.zeros((D,), jnp.float32)
    p["pwff"] = pwff

    enc = []
    for _ in range(n_layers):
        lp = {}
        lp["w_qkv"], lp["b_qkv"] = dense(D, 3 * D)      # fused in-proj (as in PyTorch)
        lp["wo"], lp["bo"] = dense(D, D)
        lp["ff_w1"], lp["ff_b1"] = dense(D, 4 * D)
        lp["ff_w2"], lp["ff_b2"] = dense(4 * D, D)
        lp["ln1_g"] = jnp.ones((D,), jnp.float32); lp["ln1_b"] = jnp.zeros((D,), jnp.float32)
        lp["ln2_g"] = jnp.ones((D,), jnp.float32); lp["ln2_b"] = jnp.zeros((D,), jnp.float32)
        enc.append(lp)
    p["encoder"] = enc

    cls = {}
    cls["w1"], cls["b1"] = dense(D, D // 2)
    cls["w2"], cls["b2"] = dense(D // 2, 2)
    p["cls"] = cls

    p["temp"] = jnp.array(0.07, jnp.float32)

    iq = jax.random.normal(next(ki), (D, queue_size), jnp.float32)
    tq = jax.random.normal(next(ki), (D, queue_size), jnp.float32)
    p["image_queue"] = iq / jnp.linalg.norm(iq, axis=0, keepdims=True)
    p["text_queue"] = tq / jnp.linalg.norm(tq, axis=0, keepdims=True)
    return p


# ----------------------------------------------------------------------------
# Main
# ----------------------------------------------------------------------------

if __name__ == "__main__":
    D = 128         # opt.tran_dim (small; must be divisible by 64)
    D_BERT = 128    # synthetic BERT hidden size (real model uses 768)
    B, ST, SI = 2, 8, 8
    QUEUE = 256     # reduced from 65536 for the synthetic run (multiple of the 128 tile)
    N_LAYERS = 2    # opt.tran_num_layers

    key = jax.random.PRNGKey(0)
    k_in, k_par = jax.random.split(key)
    k_txt, k_img = jax.random.split(k_in)

    # Synthetic frozen-encoder outputs (BERT / ViT last_hidden_state).
    text_hidden = jax.random.normal(k_txt, (B, ST, D_BERT), jnp.float32)
    image_hidden = jax.random.normal(k_img, (B, SI, D), jnp.float32)

    params = init_params(k_par, D, D_BERT, N_LAYERS, QUEUE)

    (logits, image_init, text_init, text_length,
     loss_ita, new_queues) = cl_model_forward(params, text_hidden, image_hidden, alpha=0.5)

    jax.block_until_ready((logits, image_init, text_init, loss_ita, new_queues))
    assert logits.shape == (B, 2)
    assert image_init.shape == (B, SI, D) and text_init.shape == (B, ST, D)
    assert loss_ita.shape == ()
    assert bool(jnp.isfinite(loss_ita))
    print("KERNEL_OK")
</pallas_src>

<mosaic_0001>
module attributes {stable_mosaic.version = 11 : i64} {
  func.func @_text_front_kernel(%arg0: i32, %arg1: memref<16x128xf32, #tpu.memory_space<vmem>>, %arg2: memref<128x128xf32, #tpu.memory_space<vmem>>, %arg3: memref<1x128xf32, #tpu.memory_space<vmem>>, %arg4: memref<128x128xf32, #tpu.memory_space<vmem>>, %arg5: memref<1x128xf32, #tpu.memory_space<vmem>>, %arg6: memref<16x128xf32, #tpu.memory_space<vmem>>, %arg7: memref<16x128xf32, #tpu.memory_space<vmem>>) attributes {dimension_semantics = [#tpu.dimension_semantics<arbitrary>], iteration_bounds = array<i64: 1>, scalar_prefetch = 0 : i64, scratch_operands = 0 : i64, tpu.core_type = #tpu.core_type<tc>, window_params = [{pipeline_mode = #tpu.pipeline_mode<synchronous>, transform_indices = @transform_0, window_bounds = array<i64: 16, 128>}, {pipeline_mode = #tpu.pipeline_mode<synchronous>, transform_indices = @transform_1, window_bounds = array<i64: 128, 128>}, {pipeline_mode = #tpu.pipeline_mode<synchronous>, transform_indices = @transform_2, window_bounds = array<i64: 1, 128>}, {pipeline_mode = #tpu.pipeline_mode<synchronous>, transform_indices = @transform_3, window_bounds = array<i64: 128, 128>}, {pipeline_mode = #tpu.pipeline_mode<synchronous>, transform_indices = @transform_4, window_bounds = array<i64: 1, 128>}, {pipeline_mode = #tpu.pipeline_mode<synchronous>, transform_indices = @transform_5, window_bounds = array<i64: 16, 128>}, {pipeline_mode = #tpu.pipeline_mode<synchronous>, transform_indices = @transform_6, window_bounds = array<i64: 16, 128>}]} {
    %c0 = arith.constant 0 : index
    %c0_0 = arith.constant 0 : index
    %0 = vector.load %arg1[%c0, %c0_0] : memref<16x128xf32, #tpu.memory_space<vmem>>, vector<16x128xf32>
    %c0_1 = arith.constant 0 : index
    %c0_2 = arith.constant 0 : index
    %1 = vector.load %arg2[%c0_1, %c0_2] : memref<128x128xf32, #tpu.memory_space<vmem>>, vector<128x128xf32>
    %2 = arith.truncf %0 : vector<16x128xf32> to vector<16x128xbf16>
    %3 = arith.truncf %1 : vector<128x128xf32> to vector<128x128xbf16>
    %cst = arith.constant dense<0.000000e+00> : vector<16x128xf32>
    %4 = tpu.matmul %2, %3, %cst {dimension_numbers = #tpu.dot_dimension_numbers<[1], [0], [0], [1], [0, 0, 1, 1], [], []>} : vector<16x128xbf16>, vector<128x128xbf16>, vector<16x128xf32> -> vector<16x128xf32>
    %c0_3 = arith.constant 0 : index
    %c0_4 = arith.constant 0 : index
    %5 = vector.load %arg3[%c0_3, %c0_4] : memref<1x128xf32, #tpu.memory_space<vmem>>, vector<1x128xf32>
    %6 = vector.broadcast %5 : vector<1x128xf32> to vector<16x128xf32>
    %7 = arith.addf %4, %6 : vector<16x128xf32>
    %cst_5 = arith.constant 5.000000e-01 : f32
    %8 = vector.broadcast %cst_5 : f32 to vector<16x128xf32>
    %9 = arith.mulf %7, %8 : vector<16x128xf32>
    %cst_6 = arith.constant 1.41421354 : f32
    %10 = vector.broadcast %cst_6 : f32 to vector<16x128xf32>
    %11 = arith.divf %7, %10 : vector<16x128xf32>
    %12 = math.erf %11 : vector<16x128xf32>
    %cst_7 = arith.constant 1.000000e+00 : f32
    %13 = vector.broadcast %cst_7 : f32 to vector<16x128xf32>
    %14 = arith.addf %13, %12 : vector<16x128xf32>
    %15 = arith.mulf %9, %14 : vector<16x128xf32>
    %c0_8 = arith.constant 0 : index
    %c0_9 = arith.constant 0 : index
    %16 = vector.load %arg6[%c0_8, %c0_9] : memref<16x128xf32, #tpu.memory_space<vmem>>, vector<16x128xf32>
    tpu.vector_store %arg6[%c0_8, %c0_9], %15 {strides = array<i32>} : memref<16x128xf32, #tpu.memory_space<vmem>>, vector<16x128xf32>,
    %c0_10 = arith.constant 0 : index
    %c0_11 = arith.constant 0 : index
    %17 = vector.load %arg4[%c0_10, %c0_11] : memref<128x128xf32, #tpu.memory_space<vmem>>, vector<128x128xf32>
    %18 = arith.truncf %15 : vector<16x128xf32> to vector<16x128xbf16>
    %19 = arith.truncf %17 : vector<128x128xf32> to vector<128x128xbf16>
    %cst_12 = arith.constant dense<0.000000e+00> : vector<16x128xf32>
    %20 = tpu.matmul %18, %19, %cst_12 {dimension_numbers = #tpu.dot_dimension_numbers<[1], [0], [0], [1], [0, 0, 1, 1], [], []>} : vector<16x128xbf16>, vector<128x128xbf16>, vector<16x128xf32> -> vector<16x128xf32>
    %c0_13 = arith.constant 0 : index
    %c0_14 = arith.constant 0 : index
    %21 = vector.load %arg5[%c0_13, %c0_14] : memref<1x128xf32, #tpu.memory_space<vmem>>, vector<1x128xf32>
    %22 = vector.broadcast %21 : vector<1x128xf32> to vector<16x128xf32>
    %23 = arith.addf %20, %22 : vector<16x128xf32>
    %c0_15 = arith.constant 0 : index
    %c0_16 = arith.constant 0 : index
    %24 = vector.load %arg7[%c0_15, %c0_16] : memref<16x128xf32, #tpu.memory_space<vmem>>, vector<16x128xf32>
    tpu.vector_store %arg7[%c0_15, %c0_16], %23 {strides = array<i32>} : memref<16x128xf32, #tpu.memory_space<vmem>>, vector<16x128xf32>,
    return
  }
  func.func @transform_0(%arg0: i32) -> (i32, i32) {
    %c0_i32 = arith.constant 0 : i32
    %c0_i32_0 = arith.constant 0 : i32
    %c0_i32_1 = arith.constant 0 : i32
    return %c0_i32, %c0_i32_0 : i32, i32
  }
  func.func @transform_1(%arg0: i32) -> (i32, i32) {
    %c0_i32 = arith.constant 0 : i32
    %c0_i32_0 = arith.constant 0 : i32
    %c0_i32_1 = arith.constant 0 : i32
    return %c0_i32, %c0_i32_0 : i32, i32
  }
  func.func @transform_2(%arg0: i32) -> (i32, i32) {
    %c0_i32 = arith.constant 0 : i32
    %c0_i32_0 = arith.constant 0 : i32
    %c0_i32_1 = arith.constant 0 : i32
    return %c0_i32, %c0_i32_0 : i32, i32
  }
  func.func @transform_3(%arg0: i32) -> (i32, i32) {
    %c0_i32 = arith.constant 0 : i32
    %c0_i32_0 = arith.constant 0 : i32
    %c0_i32_1 = arith.constant 0 : i32
    return %c0_i32, %c0_i32_0 : i32, i32
  }
  func.func @transform_4(%arg0: i32) -> (i32, i32) {
    %c0_i32 = arith.constant 0 : i32
    %c0_i32_0 = arith.constant 0 : i32
    %c0_i32_1 = arith.constant 0 : i32
    return %c0_i32, %c0_i32_0 : i32, i32
  }
  func.func @transform_5(%arg0: i32) -> (i32, i32) {
    %c0_i32 = arith.constant 0 : i32
    %c0_i32_0 = arith.constant 0 : i32
    %c0_i32_1 = arith.constant 0 : i32
    return %c0_i32, %c0_i32_0 : i32, i32
  }
  func.func @transform_6(%arg0: i32) -> (i32, i32) {
    %c0_i32 = arith.constant 0 : i32
    %c0_i32_0 = arith.constant 0 : i32
    %c0_i32_1 = arith.constant 0 : i32
    return %c0_i32, %c0_i32_0 : i32, i32
  }
}

</mosaic_0001>

<llo_original>
// kernel: tpu_custom_call.1
$region0: #{tpu_custom_call.1}
  #allocation0 [shape = 'u32[]', space=smem, size = 0x4, offset = 0x4, fixed_abs, tag = 'smem constant byte address 0x4 - core index']
  #allocation1 [shape = 'u32[144,128]{1,0:T(1,128)}', space=vmem, size = 0x12000, scoped, tag = 'internal scratch']
  %s0 = inlined_call_operand.hbm [shape: f32[16,128], index: 0, kind: input, shape index: {}]
  %s1 = inlined_call_operand.hbm [shape: f32[128,128], index: 1, kind: input, shape index: {}]
  %s2 = inlined_call_operand.vmem [shape: f32[1,128], index: 2, kind: input, shape index: {}]
  %s3 = inlined_call_operand.hbm [shape: f32[128,128], index: 3, kind: input, shape index: {}]
  %s4 = inlined_call_operand.vmem [shape: f32[1,128], index: 4, kind: input, shape index: {}]
  %s5 = inlined_call_operand.hbm [shape: f32[16,128], index: 5, kind: output, shape index: {0}]
  %s6 = inlined_call_operand.hbm [shape: f32[16,128], index: 6, kind: output, shape index: {1}]
  %7 = xla_tuple %s5, %s6
  %s8 = sld [smem:[#allocation0]]
  $region50: #{tpu_custom_call.1} parent=0
    _
  %s10 = ssub.s32 1, %s8
  %s11 = scalar_select 0, %s10, %s8
  $region1: #{tpu_custom_call.1} parent=0
    #allocation2 [shape = 'u8[8192]{0}', space=vmem, size = 0x2000, scoped, tag = 'input window, operand 0, single buffered']
    #allocation3 [shape = 's32[1]{0}', space=sflag, size = 0x4, scoped, tag = 'scoped memory for tpu_custom_call.1']
    #allocation4 [shape = 's32[1]{0}', space=sflag, size = 0x4, scoped, tag = 'scoped memory for tpu_custom_call.1']
    #allocation5 [shape = 'u8[65536]{0}', space=vmem, size = 0x10000, scoped, tag = 'input window, operand 1, single buffered']
    #allocation6 [shape = 's32[1]{0}', space=sflag, size = 0x4, scoped, tag = 'scoped memory for tpu_custom_call.1']
    #allocation7 [shape = 'u8[65536]{0}', space=vmem, size = 0x10000, scoped, tag = 'input window, operand 3, single buffered']
    #allocation8 [shape = 'u8[8192]{0}', space=vmem, size = 0x2000, scoped, tag = 'output window, operand 0, single buffered']
    #allocation9 [shape = 'u8[8192]{0}', space=vmem, size = 0x2000, scoped, tag = 'output window, operand 1, single buffered']
    #allocation10 [shape = 's32[1]{0}', space=sflag, size = 0x4, scoped, tag = 'scoped memory for tpu_custom_call.1']
    %12 = vsyncpa [#allocation3], 0
    %13 = vsyncpa [#allocation6], 0
    %14 = vsyncpa [#allocation4], 0
    %15 = vsyncpa [#allocation10], 0
    // Predicated region
    $region2: #{tpu_custom_call.1} parent=1 // pred_check
      _
    $region3: #{tpu_custom_call.1} parent=1 // pred_check_branch
      %17 = sbr.rel (0) target = $region5
    $region4: #{tpu_custom_call.1} parent=1 // pred_region
      %s19 = ssub.s32 256, 256
      %20 = vsyncadd [#allocation3], %s19
      %s21 = sshll.u32 [#allocation2], 4
      %s22 = int_to_ptr.vmem [resolvable:$true] %s21
      %27 = dma.hbm_to_vmem [thread:$0]  %s0, 256, %s22, [#allocation3], 128, 128, 8
    $region5: #{tpu_custom_call.1} parent=1 // pred_fallthru
      _
    // Predicated region
    $region6: #{tpu_custom_call.1} parent=1 // pred_check
      _
    $region7: #{tpu_custom_call.1} parent=1 // pred_check_branch
      %29 = sbr.rel (0) target = $region9
    $region8: #{tpu_custom_call.1} parent=1 // pred_region
      %s31 = ssub.s32 2048, 2048
      %32 = vsyncadd [#allocation6], %s31
      %s33 = sshll.u32 [#allocation5], 4
      %s34 = int_to_ptr.vmem [resolvable:$true] %s33
      %39 = dma.hbm_to_vmem [thread:$0]  %s1, 2048, %s34, [#allocation6], 128, 128, 8
    $region9: #{tpu_custom_call.1} parent=1 // pred_fallthru
      _
    // Predicated region
    $region10: #{tpu_custom_call.1} parent=1 // pred_check
      _
    $region11: #{tpu_custom_call.1} parent=1 // pred_check_branch
      %41 = sbr.rel (0) target = $region13
    $region12: #{tpu_custom_call.1} parent=1 // pred_region
      _
    $region13: #{tpu_custom_call.1} parent=1 // pred_fallthru
      _
    // Predicated region
    $region14: #{tpu_custom_call.1} parent=1 // pred_check
      _
    $region15: #{tpu_custom_call.1} parent=1 // pred_check_branch
      %43 = sbr.rel (0) target = $region17
    $region16: #{tpu_custom_call.1} parent=1 // pred_region
      %s45 = ssub.s32 2048, 2048
      %46 = vsyncadd [#allocation6], %s45
      %s47 = sshll.u32 [#allocation7], 4
      %s48 = int_to_ptr.vmem [resolvable:$true] %s47
      %53 = dma.hbm_to_vmem [thread:$0]  %s3, 2048, %s48, [#allocation6], 128, 128, 8
    $region17: #{tpu_custom_call.1} parent=1 // pred_fallthru
      _
    // Predicated region
    $region18: #{tpu_custom_call.1} parent=1 // pred_check
      _
    $region19: #{tpu_custom_call.1} parent=1 // pred_check_branch
      %55 = sbr.rel (0) target = $region21
    $region20: #{tpu_custom_call.1} parent=1 // pred_region
      _
    $region21: #{tpu_custom_call.1} parent=1 // pred_fallthru
      _
    // Predicated region
    $region22: #{tpu_custom_call.1} parent=1 // pred_check
      _
    $region23: #{tpu_custom_call.1} parent=1 // pred_check_branch
      %57 = sbr.rel (0) target = $region25
    $region24: #{tpu_custom_call.1} parent=1 // pred_region
      %58 = dma.done [#allocation3], 256
    $region25: #{tpu_custom_call.1} parent=1 // pred_fallthru
      _
    // Predicated region
    $region26: #{tpu_custom_call.1} parent=1 // pred_check
      _
    $region27: #{tpu_custom_call.1} parent=1 // pred_check_branch
      %60 = sbr.rel (0) target = $region29
    $region28: #{tpu_custom_call.1} parent=1 // pred_region
      %61 = dma.done [#allocation6], 2048
    $region29: #{tpu_custom_call.1} parent=1 // pred_fallthru
      _
    // Predicated region
    $region30: #{tpu_custom_call.1} parent=1 // pred_check
      _
    $region31: #{tpu_custom_call.1} parent=1 // pred_check_branch
      %63 = sbr.rel (0) target = $region33
    $region32: #{tpu_custom_call.1} parent=1 // pred_region
      %64 = dma.done [#allocation6], 2048
    $region33: #{tpu_custom_call.1} parent=1 // pred_fallthru
      _
    %v66 = vld [vmem:[#allocation2] sm:$0xff]
    %v67 = vld [vmem:[#allocation2 + $0x8] sm:$0xff]
    %v68 = vld [vmem:[#allocation5] sm:$0xff]
    %v69 = vld [vmem:[#allocation5 + $0x8] sm:$0xff]
    %v70 = vld [vmem:[#allocation5 + $0x10] sm:$0xff]
    %v71 = vld [vmem:[#allocation5 + $0x18] sm:$0xff]
    %v72 = vld [vmem:[#allocation5 + $0x20] sm:$0xff]
    %v73 = vld [vmem:[#allocation5 + $0x28] sm:$0xff]
    %v74 = vld [vmem:[#allocation5 + $0x30] sm:$0xff]
    %v75 = vld [vmem:[#allocation5 + $0x38] sm:$0xff]
    %v76 = vld [vmem:[#allocation5 + $0x40] sm:$0xff]
    %v77 = vld [vmem:[#allocation5 + $0x48] sm:$0xff]
    %v78 = vld [vmem:[#allocation5 + $0x50] sm:$0xff]
    %v79 = vld [vmem:[#allocation5 + $0x58] sm:$0xff]
    %v80 = vld [vmem:[#allocation5 + $0x60] sm:$0xff]
    %v81 = vld [vmem:[#allocation5 + $0x68] sm:$0xff]
    %v82 = vld [vmem:[#allocation5 + $0x70] sm:$0xff]
    %v83 = vld [vmem:[#allocation5 + $0x78] sm:$0xff]
    %v84 = vpack.c.bf16 %v67, %v66
    %v85 = vpack.c.bf16 %v69, %v68
    %v86 = vpack.c.bf16 %v71, %v70
    %v87 = vpack.c.bf16 %v73, %v72
    %v88 = vpack.c.bf16 %v75, %v74
    %v89 = vpack.c.bf16 %v77, %v76
    %v90 = vpack.c.bf16 %v79, %v78
    %v91 = vpack.c.bf16 %v81, %v80
    %v92 = vpack.c.bf16 %v83, %v82
    %v93 = vld [vmem:[%s2] sm:$0x1]
    %v95 = vlaneseq
    %v96 = vshrl.u32 %v95, 7
    %v97 = vsub.s32 0, %v96
    %v98 = vrot.slane %v93, %v97
    %100 = vmatprep.subr.bf16.mxu0 0
    %101 = vmatpush1.bf16.msra.mxu0 %v85
    %102 = vmatprep.subr.bf16.mxu0 0
    %103 = vmatpush1.bf16.msra.mxu0 %v86
    %104 = vmatprep.subr.bf16.mxu0 0
    %105 = vmatpush1.bf16.msra.mxu0 %v87
    %106 = vmatprep.subr.bf16.mxu0 0
    %107 = vmatpush1.bf16.msra.mxu0 %v88
    %108 = vmatprep.subr.bf16.mxu0 0
    %109 = vmatpush1.bf16.msra.mxu0 %v89
    %110 = vmatprep.subr.bf16.mxu0 0
    %111 = vmatpush1.bf16.msra.mxu0 %v90
    %112 = vmatprep.subr.bf16.mxu0 0
    %113 = vmatpush1.bf16.msra.mxu0 %v91
    %114 = vmatprep.subr.bf16.mxu0 0
    %115 = vmatpush1.bf16.msra.mxu0 %v92
    %116 = vmatprep.subr.bf16.mxu0 0
    %117 = vmatpush1.bf16.msra.mxu0 0
    %118 = vmatprep.subr.bf16.mxu0 0
    %119 = vmatpush1.bf16.msra.mxu0 0
    %120 = vmatprep.subr.bf16.mxu0 0
    %121 = vmatpush1.bf16.msra.mxu0 0
    %122 = vmatprep.subr.bf16.mxu0 0
    %123 = vmatpush1.bf16.msra.mxu0 0
    %124 = vmatprep.subr.bf16.mxu0 0
    %125 = vmatpush1.bf16.msra.mxu0 0
    %126 = vmatprep.subr.bf16.mxu0 0
    %127 = vmatpush1.bf16.msra.mxu0 0
    %128 = vmatprep.subr.bf16.mxu0 0
    %129 = vmatpush1.bf16.msra.mxu0 0
    %130 = vmatprep.subr.bf16.mxu0 0
    %131 = vmatpush1.bf16.msra.mxu0 0
    %132 = vmatprep.mubr.bf16.mxu0 0
    %133 = vmatmul.mubr.bf16.gmra.mrb[0].mxu0 %v84
    %v134 = vpop.f32.mrb[0].mxu0
    %v135 = vadd.f32 %v98, %v134
    %v136 = vpop.f32.mrb[0].mxu0
    %v137 = vpop.f32.mrb[0].mxu0
    %v138 = vadd.f32 %v98, %v137
    %v139 = vpop.f32.mrb[0].mxu0
    %140 = vdwg.mxu0
    %v141 = vmul.f32 %v135, 0.5
    %v142 = vmul.f32 %v138, 0.5
    %v143 = vrcp.pop 1.4142135
    %v144 = vmul.f32 %v135, %v143
    %v145 = vmul.f32 %v138, %v143
    %v146 = verf.f32.pop %v144
    %v147 = verf.f32.pop %v145
    %v148 = vadd.f32 %v146, 1.0
    %v149 = vadd.f32 %v147, 1.0
    %v150 = vmul.f32 %v141, %v148
    %v151 = vmul.f32 %v142, %v149
    %152 = vst [vmem:[#allocation8] sm:$0xff] %v150
    %153 = vst [vmem:[#allocation8 + $0x8] sm:$0xff] %v151
    %v154 = vld [vmem:[#allocation7] sm:$0xff]
    %v155 = vld [vmem:[#allocation7 + $0x8] sm:$0xff]
    %v156 = vld [vmem:[#allocation7 + $0x10] sm:$0xff]
    %v157 = vld [vmem:[#allocation7 + $0x18] sm:$0xff]
    %v158 = vld [vmem:[#allocation7 + $0x20] sm:$0xff]
    %v159 = vld [vmem:[#allocation7 + $0x28] sm:$0xff]
    %v160 = vld [vmem:[#allocation7 + $0x30] sm:$0xff]
    %v161 = vld [vmem:[#allocation7 + $0x38] sm:$0xff]
    %v162 = vld [vmem:[#allocation7 + $0x40] sm:$0xff]
    %v163 = vld [vmem:[#allocation7 + $0x48] sm:$0xff]
    %v164 = vld [vmem:[#allocation7 + $0x50] sm:$0xff]
    %v165 = vld [vmem:[#allocation7 + $0x58] sm:$0xff]
    %v166 = vld [vmem:[#allocation7 + $0x60] sm:$0xff]
    %v167 = vld [vmem:[#allocation7 + $0x68] sm:$0xff]
    %v168 = vld [vmem:[#allocation7 + $0x70] sm:$0xff]
    %v169 = vld [vmem:[#allocation7 + $0x78] sm:$0xff]
    %v170 = vpack.c.bf16 %v151, %v150
    %v171 = vpack.c.bf16 %v155, %v154
    %v172 = vpack.c.bf16 %v157, %v156
    %v173 = vpack.c.bf16 %v159, %v158
    %v174 = vpack.c.bf16 %v161, %v160
    %v175 = vpack.c.bf16 %v163, %v162
    %v176 = vpack.c.bf16 %v165, %v164
    %v177 = vpack.c.bf16 %v167, %v166
    %v178 = vpack.c.bf16 %v169, %v168
    %v179 = vld [vmem:[%s4] sm:$0x1]
    %v181 = vlaneseq
    %v182 = vshrl.u32 %v181, 7
    %v183 = vsub.s32 0, %v182
    %v184 = vrot.slane %v179, %v183
    %186 = vmatprep.subr.bf16.mxu0 0
    %187 = vmatpush1.bf16.msra.mxu0 %v171
    %188 = vmatprep.subr.bf16.mxu0 0
    %189 = vmatpush1.bf16.msra.mxu0 %v172
    %190 = vmatprep.subr.bf16.mxu0 0
    %191 = vmatpush1.bf16.msra.mxu0 %v173
    %192 = vmatprep.subr.bf16.mxu0 0
    %193 = vmatpush1.bf16.msra.mxu0 %v174
    %194 = vmatprep.subr.bf16.mxu0 0
    %195 = vmatpush1.bf16.msra.mxu0 %v175
    %196 = vmatprep.subr.bf16.mxu0 0
    %197 = vmatpush1.bf16.msra.mxu0 %v176
    %198 = vmatprep.subr.bf16.mxu0 0
    %199 = vmatpush1.bf16.msra.mxu0 %v177
    %200 = vmatprep.subr.bf16.mxu0 0
    %201 = vmatpush1.bf16.msra.mxu0 %v178
    %202 = vmatprep.subr.bf16.mxu0 0
    %203 = vmatpush1.bf16.msra.mxu0 0
    %204 = vmatprep.subr.bf16.mxu0 0
    %205 = vmatpush1.bf16.msra.mxu0 0
    %206 = vmatprep.subr.bf16.mxu0 0
    %207 = vmatpush1.bf16.msra.mxu0 0
    %208 = vmatprep.subr.bf16.mxu0 0
    %209 = vmatpush1.bf16.msra.mxu0 0
    %210 = vmatprep.subr.bf16.mxu0 0
    %211 = vmatpush1.bf16.msra.mxu0 0
    %212 = vmatprep.subr.bf16.mxu0 0
    %213 = vmatpush1.bf16.msra.mxu0 0
    %214 = vmatprep.subr.bf16.mxu0 0
    %215 = vmatpush1.bf16.msra.mxu0 0
    %216 = vmatprep.subr.bf16.mxu0 0
    %217 = vmatpush1.bf16.msra.mxu0 0
    %218 = vmatprep.mubr.bf16.mxu0 0
    %219 = vmatmul.mubr.bf16.gmra.mrb[0].mxu0 %v170
    %v220 = vpop.f32.mrb[0].mxu0
    %v221 = vadd.f32 %v184, %v220
    %v222 = vpop.f32.mrb[0].mxu0
    %v223 = vpop.f32.mrb[0].mxu0
    %v224 = vadd.f32 %v184, %v223
    %v225 = vpop.f32.mrb[0].mxu0
    %226 = vdwg.mxu0
    %227 = vst [vmem:[#allocation9] sm:$0xff] %v221
    %228 = vst [vmem:[#allocation9 + $0x8] sm:$0xff] %v224
    // Predicated region
    $region34: #{tpu_custom_call.1} parent=1 // pred_check
      _
    $region35: #{tpu_custom_call.1} parent=1 // pred_check_branch
      %230 = sbr.rel (0) target = $region37
    $region36: #{tpu_custom_call.1} parent=1 // pred_region
      %s232 = ssub.s32 256, 256
      %233 = vsyncadd [#allocation4], %s232
      %s234 = sshll.u32 [#allocation8], 4
      %s235 = int_to_ptr.vmem [resolvable:$true] %s234
      %240 = dma.vmem_to_hbm [thread:$0]  %s235, 256, %s5, [#allocation4], 128, 128, 8
    $region37: #{tpu_custom_call.1} parent=1 // pred_fallthru
      _
    // Predicated region
    $region38: #{tpu_custom_call.1} parent=1 // pred_check
      _
    $region39: #{tpu_custom_call.1} parent=1 // pred_check_branch
      %242 = sbr.rel (0) target = $region41
    $region40: #{tpu_custom_call.1} parent=1 // pred_region
      %s244 = ssub.s32 256, 256
      %245 = vsyncadd [#allocation10], %s244
      %s246 = sshll.u32 [#allocation9], 4
      %s247 = int_to_ptr.vmem [resolvable:$true] %s246
      %252 = dma.vmem_to_hbm [thread:$0]  %s247, 256, %s6, [#allocation10], 128, 128, 8
    $region41: #{tpu_custom_call.1} parent=1 // pred_fallthru
      _
    // Predicated region
    $region42: #{tpu_custom_call.1} parent=1 // pred_check
      _
    $region43: #{tpu_custom_call.1} parent=1 // pred_check_branch
      %254 = sbr.rel (0) target = $region45
    $region44: #{tpu_custom_call.1} parent=1 // pred_region
      %255 = dma.done [#allocation4], 256
    $region45: #{tpu_custom_call.1} parent=1 // pred_fallthru
      _
    // Predicated region
    $region46: #{tpu_custom_call.1} parent=1 // pred_check
      _
    $region47: #{tpu_custom_call.1} parent=1 // pred_check_branch
      %257 = sbr.rel (0) target = $region49
    $region48: #{tpu_custom_call.1} parent=1 // pred_region
      %258 = dma.done [#allocation10], 256
    $region49: #{tpu_custom_call.1} parent=1 // pred_fallthru
      _
    %259 = vsyncpa [#allocation3], 1
    %260 = vsyncpa [#allocation6], 1
    %261 = vsyncpa [#allocation4], 1
    %262 = vsyncpa [#allocation10], 1

</llo_original>
